<compile_context>
chip_gen: v7x
topology: tpu7x:2x2x1
jax: 0.10.0
libtpu: 0.0.40
codegen_flags: <defaults>
</compile_context>

<pallas_src>
import jax
import jax.numpy as jnp
from jax.experimental import pallas as pl
from jax.experimental.pallas import tpu as pltpu

LANE = 128  # lane width; all layer widths are zero-padded to this


def qnet_duel_kernel(s_ref, w_ref, b_ref, o_ref):
    """s_ref: (T, S) state tile; w_ref: (S + 3*LANE, LANE) packed weights;
    b_ref: (8, LANE) packed biases (rows 0..3 used); o_ref: (T, LANE) padded q."""
    lane = w_ref.shape[1]
    s_rows = w_ref.shape[0] - 3 * lane  # rows of the first (state -> mid) block

    x = s_ref[...]  # (T, S)

    def layer(h, w, b, relu=True):
        y = jnp.dot(h, w, preferred_element_type=jnp.float32) + b
        return jnp.maximum(y, 0.0) if relu else y

    # head: Linear+ReLU, Linear+ReLU (zero-padded to 128 lanes)
    h = layer(x, w_ref[0:s_rows, :], b_ref[0:1, :])
    h = layer(h, w_ref[s_rows:s_rows + lane, :], b_ref[1:2, :])
    # fused [value | advantage] hidden layer: one dot + one ReLU
    h = layer(h, w_ref[s_rows + lane:s_rows + 2 * lane, :], b_ref[2:3, :])
    # fused output layer: q = val + adv - mean(adv) (mean pre-folded into weights)
    o_ref[...] = layer(h, w_ref[s_rows + 2 * lane:s_rows + 3 * lane, :],
                       b_ref[3:4, :], relu=False)


def pack_params(p, state_dim, action_dim, mid_dim, lane=LANE):
    """One-time wrapper-side packing: fuse branches, fold the dueling mean, zero-pad
    everything to `lane` columns, and lay the four layers out in a single slab."""
    M, A = mid_dim, action_dim
    assert state_dim <= lane and 2 * M <= lane and A <= lane, \
        "this packing assumes all layer widths fit in one 128-lane tile"
    s_rows = ((state_dim + 7) // 8) * 8  # sublane-aligned row count for W1

    w = jnp.zeros((s_rows + 3 * lane, lane), jnp.float32)
    b = jnp.zeros((8, lane), jnp.float32)

    # layer 1: state -> mid
    w = w.at[0:state_dim, 0:M].set(p["w1"])
    b = b.at[0, 0:M].set(p["b1"][0])
    # layer 2: mid -> mid
    r = s_rows
    w = w.at[r:r + M, 0:M].set(p["w2"])
    b = b.at[1, 0:M].set(p["b2"][0])
    # layer 3: fused [value | advantage] hidden layer, mid -> 2*mid
    r = s_rows + lane
    w = w.at[r:r + M, 0:M].set(p["wv1"])
    w = w.at[r:r + M, M:2 * M].set(p["wa1"])
    b = b.at[2, 0:M].set(p["bv1"][0])
    b = b.at[2, M:2 * M].set(p["ba1"][0])
    # layer 4: fused output; dueling mean folded into centered advantage weights
    r = s_rows + 2 * lane
    wa2_c = p["wa2"] - jnp.mean(p["wa2"], axis=1, keepdims=True)   # (M, A)
    ba2_c = p["ba2"][0] - jnp.mean(p["ba2"][0])                    # (A,)
    w = w.at[r:r + M, 0:A].set(jnp.tile(p["wv2"], (1, A)))         # value col-broadcast
    w = w.at[r + M:r + 2 * M, 0:A].set(wa2_c)
    b = b.at[3, 0:A].set(p["bv2"][0, 0] + ba2_c)
    return w, b


def qnet_duel_forward(state, w_slab, b_slab, *, action_dim, batch_tile=128):
    """state: (B, state_dim) f32. Returns q: (B, action_dim) f32."""
    B, s_in = state.shape
    lane = w_slab.shape[1]
    s_rows = w_slab.shape[0] - 3 * lane

    b_pad = ((B + batch_tile - 1) // batch_tile) * batch_tile
    if b_pad != B or s_rows != s_in:
        state = jnp.pad(state, ((0, b_pad - B), (0, s_rows - s_in)))

    grid = (b_pad // batch_tile,)
    out = pl.pallas_call(
        qnet_duel_kernel,
        out_shape=jax.ShapeDtypeStruct((b_pad, lane), jnp.float32),
        grid=grid,
        in_specs=[
            pl.BlockSpec((batch_tile, s_rows), lambda i: (i, 0)),      # state tile
            pl.BlockSpec((w_slab.shape[0], lane), lambda i: (0, 0)),   # weights, resident
            pl.BlockSpec((b_slab.shape[0], lane), lambda i: (0, 0)),   # biases, resident
        ],
        out_specs=pl.BlockSpec((batch_tile, lane), lambda i: (i, 0)),  # lane-dense store
        compiler_params=pltpu.CompilerParams(
            dimension_semantics=("parallel",)),  # shards batch tiles across TCs on v7x
    )(state, w_slab, b_slab)
    return out[:B, :action_dim]


def init_params(key, state_dim, action_dim, mid_dim):
    """Deterministic synthetic init (PyTorch-like uniform fan-in bounds);
    weights stored already transposed to (in, out)."""
    def linear(key, fan_in, fan_out):
        kw, kb = jax.random.split(key)
        bound = 1.0 / jnp.sqrt(fan_in)
        w = jax.random.uniform(kw, (fan_in, fan_out), jnp.float32, -bound, bound)
        b = jax.random.uniform(kb, (1, fan_out), jnp.float32, -bound, bound)
        return w, b

    keys = jax.random.split(key, 6)
    w1, b1 = linear(keys[0], state_dim, mid_dim)
    w2, b2 = linear(keys[1], mid_dim, mid_dim)
    wv1, bv1 = linear(keys[2], mid_dim, mid_dim)
    wv2, bv2 = linear(keys[3], mid_dim, 1)
    wa1, ba1 = linear(keys[4], mid_dim, mid_dim)
    wa2, ba2 = linear(keys[5], mid_dim, action_dim)
    return dict(w1=w1, b1=b1, w2=w2, b2=b2,
                wv1=wv1, bv1=bv1, wv2=wv2, bv2=bv2,
                wa1=wa1, ba1=ba1, wa2=wa2, ba2=ba2)


def reference_forward(state, p):
    """Straight port of QNetDuel.forward (un-fused, with explicit adv.mean)."""
    relu = lambda x: jnp.maximum(x, 0.0)
    h = relu(state @ p["w1"] + p["b1"])
    h = relu(h @ p["w2"] + p["b2"])
    val = relu(h @ p["wv1"] + p["bv1"]) @ p["wv2"] + p["bv2"]
    adv = relu(h @ p["wa1"] + p["ba1"]) @ p["wa2"] + p["ba2"]
    return val + adv - adv.mean(axis=1, keepdims=True)


if __name__ == "__main__":
    state_dim, action_dim, mid_dim = 16, 4, 32
    batch = 256        # real batch so the grid/parallel axis does useful work
    batch_tile = 128

    key = jax.random.PRNGKey(0)
    k_state, k_params = jax.random.split(key)
    state = jax.random.normal(k_state, (batch, state_dim), jnp.float32)
    raw = init_params(k_params, state_dim, action_dim, mid_dim)

    # One-time packing (outside the hot path).
    w_slab, b_slab = pack_params(raw, state_dim, action_dim, mid_dim)

    fwd = jax.jit(qnet_duel_forward, static_argnames=("action_dim", "batch_tile"))
    q = fwd(state, w_slab, b_slab, action_dim=action_dim, batch_tile=batch_tile)
    q = jax.block_until_ready(q)

    q_ref = reference_forward(state, raw)
    assert q.shape == (batch, action_dim)
    assert jnp.allclose(q, q_ref, atol=1e-4, rtol=1e-4), "mismatch vs reference"

    print("KERNEL_OK")
</pallas_src>

<mosaic_0001>
module attributes {stable_mosaic.version = 11 : i64} {
  func.func @qnet_duel_kernel(%arg0: i32, %arg1: memref<128x16xf32, #tpu.memory_space<vmem>>, %arg2: memref<400x128xf32, #tpu.memory_space<vmem>>, %arg3: memref<8x128xf32, #tpu.memory_space<vmem>>, %arg4: memref<128x128xf32, #tpu.memory_space<vmem>>) attributes {dimension_semantics = [#tpu.dimension_semantics<parallel>], iteration_bounds = array<i64: 2>, scalar_prefetch = 0 : i64, scratch_operands = 0 : i64, tpu.core_type = #tpu.core_type<tc>, window_params = [{transform_indices = @transform_0, window_bounds = array<i64: 128, 16>}, {pipeline_mode = #tpu.pipeline_mode<synchronous>, transform_indices = @transform_1, window_bounds = array<i64: 400, 128>}, {pipeline_mode = #tpu.pipeline_mode<synchronous>, transform_indices = @transform_2, window_bounds = array<i64: 8, 128>}, {transform_indices = @transform_3, window_bounds = array<i64: 128, 128>}]} {
    %c0 = arith.constant 0 : index
    %c0_0 = arith.constant 0 : index
    %0 = vector.load %arg1[%c0, %c0_0] : memref<128x16xf32, #tpu.memory_space<vmem>>, vector<128x16xf32>
    %c0_1 = arith.constant 0 : index
    %c0_2 = arith.constant 0 : index
    %1 = vector.load %arg2[%c0_1, %c0_2] : memref<400x128xf32, #tpu.memory_space<vmem>>, vector<16x128xf32>
    %c0_3 = arith.constant 0 : index
    %c0_4 = arith.constant 0 : index
    %2 = vector.load %arg3[%c0_3, %c0_4] : memref<8x128xf32, #tpu.memory_space<vmem>>, vector<1x128xf32>
    %cst = arith.constant dense<0.000000e+00> : vector<128x128xf32>
    %3 = tpu.matmul %0, %1, %cst {dimension_numbers = #tpu.dot_dimension_numbers<[1], [0], [0], [1], [0, 0, 1, 1], [], []>} : vector<128x16xf32>, vector<16x128xf32>, vector<128x128xf32> -> vector<128x128xf32>
    %4 = vector.broadcast %2 : vector<1x128xf32> to vector<128x128xf32>
    %5 = arith.addf %3, %4 : vector<128x128xf32>
    %cst_5 = arith.constant 0.000000e+00 : f32
    %6 = vector.broadcast %cst_5 : f32 to vector<128x128xf32>
    %7 = arith.maximumf %5, %6 : vector<128x128xf32>
    %c16 = arith.constant 16 : index
    %c0_6 = arith.constant 0 : index
    %8 = vector.load %arg2[%c16, %c0_6] : memref<400x128xf32, #tpu.memory_space<vmem>>, vector<128x128xf32>
    %c1 = arith.constant 1 : index
    %c0_7 = arith.constant 0 : index
    %9 = vector.load %arg3[%c1, %c0_7] : memref<8x128xf32, #tpu.memory_space<vmem>>, vector<1x128xf32>
    %cst_8 = arith.constant dense<0.000000e+00> : vector<128x128xf32>
    %10 = tpu.matmul %7, %8, %cst_8 {dimension_numbers = #tpu.dot_dimension_numbers<[1], [0], [0], [1], [0, 0, 1, 1], [], []>} : vector<128x128xf32>, vector<128x128xf32>, vector<128x128xf32> -> vector<128x128xf32>
    %11 = vector.broadcast %9 : vector<1x128xf32> to vector<128x128xf32>
    %12 = arith.addf %10, %11 : vector<128x128xf32>
    %cst_9 = arith.constant 0.000000e+00 : f32
    %13 = vector.broadcast %cst_9 : f32 to vector<128x128xf32>
    %14 = arith.maximumf %12, %13 : vector<128x128xf32>
    %c144 = arith.constant 144 : index
    %c0_10 = arith.constant 0 : index
    %15 = vector.load %arg2[%c144, %c0_10] : memref<400x128xf32, #tpu.memory_space<vmem>>, vector<128x128xf32>
    %c2 = arith.constant 2 : index
    %c0_11 = arith.constant 0 : index
    %16 = vector.load %arg3[%c2, %c0_11] : memref<8x128xf32, #tpu.memory_space<vmem>>, vector<1x128xf32>
    %cst_12 = arith.constant dense<0.000000e+00> : vector<128x128xf32>
    %17 = tpu.matmul %14, %15, %cst_12 {dimension_numbers = #tpu.dot_dimension_numbers<[1], [0], [0], [1], [0, 0, 1, 1], [], []>} : vector<128x128xf32>, vector<128x128xf32>, vector<128x128xf32> -> vector<128x128xf32>
    %18 = vector.broadcast %16 : vector<1x128xf32> to vector<128x128xf32>
    %19 = arith.addf %17, %18 : vector<128x128xf32>
    %cst_13 = arith.constant 0.000000e+00 : f32
    %20 = vector.broadcast %cst_13 : f32 to vector<128x128xf32>
    %21 = arith.maximumf %19, %20 : vector<128x128xf32>
    %c272 = arith.constant 272 : index
    %c0_14 = arith.constant 0 : index
    %22 = vector.load %arg2[%c272, %c0_14] : memref<400x128xf32, #tpu.memory_space<vmem>>, vector<128x128xf32>
    %c3 = arith.constant 3 : index
    %c0_15 = arith.constant 0 : index
    %23 = vector.load %arg3[%c3, %c0_15] : memref<8x128xf32, #tpu.memory_space<vmem>>, vector<1x128xf32>
    %cst_16 = arith.constant dense<0.000000e+00> : vector<128x128xf32>
    %24 = tpu.matmul %21, %22, %cst_16 {dimension_numbers = #tpu.dot_dimension_numbers<[1], [0], [0], [1], [0, 0, 1, 1], [], []>} : vector<128x128xf32>, vector<128x128xf32>, vector<128x128xf32> -> vector<128x128xf32>
    %25 = vector.broadcast %23 : vector<1x128xf32> to vector<128x128xf32>
    %26 = arith.addf %24, %25 : vector<128x128xf32>
    %c0_17 = arith.constant 0 : index
    %c0_18 = arith.constant 0 : index
    %27 = vector.load %arg4[%c0_17, %c0_18] : memref<128x128xf32, #tpu.memory_space<vmem>>, vector<128x128xf32>
    tpu.vector_store %arg4[%c0_17, %c0_18], %26 {strides = array<i32>} : memref<128x128xf32, #tpu.memory_space<vmem>>, vector<128x128xf32>,
    return
  }
  func.func @transform_0(%arg0: i32) -> (i32, i32) {
    %c0_i32 = arith.constant 0 : i32
    %c0_i32_0 = arith.constant 0 : i32
    return %arg0, %c0_i32 : i32, i32
  }
  func.func @transform_1(%arg0: i32) -> (i32, i32) {
    %c0_i32 = arith.constant 0 : i32
    %c0_i32_0 = arith.constant 0 : i32
    %c0_i32_1 = arith.constant 0 : i32
    return %c0_i32, %c0_i32_0 : i32, i32
  }
  func.func @transform_2(%arg0: i32) -> (i32, i32) {
    %c0_i32 = arith.constant 0 : i32
    %c0_i32_0 = arith.constant 0 : i32
    %c0_i32_1 = arith.constant 0 : i32
    return %c0_i32, %c0_i32_0 : i32, i32
  }
  func.func @transform_3(%arg0: i32) -> (i32, i32) {
    %c0_i32 = arith.constant 0 : i32
    %c0_i32_0 = arith.constant 0 : i32
    return %arg0, %c0_i32 : i32, i32
  }
}

</mosaic_0001>

<llo_original>
// kernel: qnet_duel_forward.1
$region0: #{qnet_duel_forward.1}
  #allocation0 [shape = 'u32[]', space=smem, size = 0x4, offset = 0x4, fixed_abs, tag = 'smem constant byte address 0x4 - core index']
  #allocation1 [shape = 'u32[144,128]{1,0:T(1,128)}', space=vmem, size = 0x12000, scoped, tag = 'internal scratch']
  %s0 = inlined_call_operand.vmem [shape: f32[256,16], index: 0, kind: input, shape index: {}]
  %s1 = inlined_call_operand.hbm [shape: f32[400,128], index: 1, kind: input, shape index: {}]
  %s2 = inlined_call_operand.vmem [shape: f32[8,128], index: 2, kind: input, shape index: {}]
  %s3 = inlined_call_operand.vmem [shape: f32[256,128], index: 3, kind: output, shape index: {}]
  %s4 = sld [smem:[#allocation0]]
  $region49: #{qnet_duel_forward.1} parent=0
    _
  %s6 = ssub.s32 1, %s4
  %s7 = scalar_select 0, %s6, %s4
  $region1: #{qnet_duel_forward.1} parent=0
    #allocation2 [shape = 'u8[204800]{0}', space=vmem, size = 0x32000, scoped, tag = 'input window, operand 1, single buffered']
    #allocation3 [shape = 's32[2]{0}', space=sflag, size = 0x8, scoped, tag = 'scoped memory for qnet_duel_forward.1']
    %8 = vsyncpa [#allocation3], 0
    loop: start=0, step=1, limit=4
    $region2: #{qnet_duel_forward.1} parent=1 // loop_pre_header
      _
    $region3: #{qnet_duel_forward.1} parent=1 // loop_header
      %s10 = sphi 0, %s14
      %p11 = scmp.ge.s32.totalorder %s10, 4
      %s20 = sphi 0, %s22
      %s23 = sphi 0, %s20
      %s24 = sphi 0, %s23
      %s40 = sphi 0, %s24
      %s44 = sphi 0, %s44
      %s46 = sphi 0, %s44
      %s47 = sphi 0, %s46
      %s61 = sphi 0, %s47
      %s65 = sphi 0, %s65
      %s67 = sphi 0, %s65
      %s68 = sphi 0, %s67
      %s82 = sphi 0, %s68
      %s88 = sphi 0, %s90
      %s91 = sphi 0, %s88
      %s92 = sphi 0, %s91
      %s108 = sphi 0, %s92
    $region4: #{qnet_duel_forward.1} parent=1 // loop_header_branch
      %13 = sbr.rel (%p11) target = $region8
    $region5: #{qnet_duel_forward.1} parent=1 // loop_body
      %s15 = ssub.s32 %s10, 1
      %s16 = ssub.s32 %s10, 2
      %s17 = sadd.s32 %s10, 1
      %s18 = ssub.s32 %s10, %s17
      %p19 = scmp.eq.s32.totalorder %s18, 0
      %s21 = sadd.s32 %s20, 1
      %s22 = scalar_select %p19, %s20, %s21
      %p25 = pneg %p19
      %p26 = scmp.eq.s32.totalorder %s10, 1
      %p27 = por %p25, %p26
      %p28 = scmp.ne.s32.totalorder %s20, %s23
      %p29 = scmp.eq.s32.totalorder %s10, 0
      %p30 = por %p28, %p29
      %p31 = scmp.ne.s32.totalorder %s20, %s23
      %p32 = scmp.eq.s32.totalorder %s15, 1
      %p33 = por %p31, %p32
      %p34 = scmp.ne.s32.totalorder %s23, %s24
      %p35 = scmp.eq.s32.totalorder %s15, 0
      %p36 = por %p34, %p35
      %p37 = scmp.ne.s32.totalorder %s23, %s24
      %p38 = scmp.eq.s32.totalorder %s16, 1
      %p39 = por %p37, %p38
      %p41 = scmp.ne.s32.totalorder %s24, %s40
      %p42 = scmp.eq.s32.totalorder %s16, 0
      %p43 = por %p41, %p42
      %s45 = sadd.s32 %s44, 1
      %p48 = scmp.eq.s32.totalorder %s10, 1
      %p49 = scmp.ne.s32.totalorder %s44, %s46
      %p50 = scmp.eq.s32.totalorder %s10, 0
      %p51 = por %p49, %p50
      %p52 = scmp.ne.s32.totalorder %s44, %s46
      %p53 = scmp.eq.s32.totalorder %s15, 1
      %p54 = por %p52, %p53
      %p55 = scmp.ne.s32.totalorder %s46, %s47
      %p56 = scmp.eq.s32.totalorder %s15, 0
      %p57 = por %p55, %p56
      %p58 = scmp.ne.s32.totalorder %s46, %s47
      %p59 = scmp.eq.s32.totalorder %s16, 1
      %p60 = por %p58, %p59
      %p62 = scmp.ne.s32.totalorder %s47, %s61
      %p63 = scmp.eq.s32.totalorder %s16, 0
      %p64 = por %p62, %p63
      %s66 = sadd.s32 %s65, 1
      %p69 = scmp.eq.s32.totalorder %s10, 1
      %p70 = scmp.ne.s32.totalorder %s65, %s67
      %p71 = scmp.eq.s32.totalorder %s10, 0
      %p72 = por %p70, %p71
      %p73 = scmp.ne.s32.totalorder %s65, %s67
      %p74 = scmp.eq.s32.totalorder %s15, 1
      %p75 = por %p73, %p74
      %p76 = scmp.ne.s32.totalorder %s67, %s68
      %p77 = scmp.eq.s32.totalorder %s15, 0
      %p78 = por %p76, %p77
      %p79 = scmp.ne.s32.totalorder %s67, %s68
      %p80 = scmp.eq.s32.totalorder %s16, 1
      %p81 = por %p79, %p80
      %p83 = scmp.ne.s32.totalorder %s68, %s82
      %p84 = scmp.eq.s32.totalorder %s16, 0
      %p85 = por %p83, %p84
      %s86 = ssub.s32 %s10, %s17
      %p87 = scmp.eq.s32.totalorder %s86, 0
      %s89 = sadd.s32 %s88, 1
      %s90 = scalar_select %p87, %s88, %s89
      %p93 = pneg %p87
      %p94 = scmp.eq.s32.totalorder %s10, 1
      %p95 = por %p93, %p94
      %p96 = scmp.ne.s32.totalorder %s88, %s91
      %p97 = scmp.eq.s32.totalorder %s10, 0
      %p98 = por %p96, %p97
      %p99 = scmp.ne.s32.totalorder %s88, %s91
      %p100 = scmp.eq.s32.totalorder %s15, 1
      %p101 = por %p99, %p100
      %p102 = scmp.ne.s32.totalorder %s91, %s92
      %p103 = scmp.eq.s32.totalorder %s15, 0
      %p104 = por %p102, %p103
      %p105 = scmp.ne.s32.totalorder %s91, %s92
      %p106 = scmp.eq.s32.totalorder %s16, 1
      %p107 = por %p105, %p106
      %p109 = scmp.ne.s32.totalorder %s92, %s108
      %p110 = scmp.eq.s32.totalorder %s16, 0
      %p111 = por %p109, %p110
      %p112 = scmp.le.s32.totalorder 1, %s10
      %p113 = scmp.lt.s32.totalorder %s10, 3
      %p114 = pnand %p112, %p113
      %p115 = pneg %p114
      // Predicated region
      $region9: #{qnet_duel_forward.1} parent=5 // pred_check
        _
      $region10: #{qnet_duel_forward.1} parent=5 // pred_check_branch
        %117 = sbr.rel (%p114) target = $region12
      $region11: #{qnet_duel_forward.1} parent=5 // pred_region
        %s118 = ssub.s32 %s10, 1
        // Predicated region
        $region13: #{qnet_duel_forward.1} parent=11 // pred_check
          %p119 = pneg %p57
        $region14: #{qnet_duel_forward.1} parent=11 // pred_check_branch
          %121 = sbr.rel (%p119) target = $region16
        $region15: #{qnet_duel_forward.1} parent=11 // pred_region
          %s123 = ssub.s32 6400, 6400
          %124 = vsyncadd [#allocation3], %s123
          %s125 = sshll.u32 [#allocation2], 4
          %s126 = int_to_ptr.vmem [resolvable:$true] %s125
          %131 = dma.hbm_to_vmem [thread:$0]  %s1, 6400, %s126, [#allocation3], 128, 128, 8
        $region16: #{qnet_duel_forward.1} parent=11 // pred_fallthru
          _
        // Predicated region
        $region17: #{qnet_duel_forward.1} parent=11 // pred_check
          %p132 = pneg %p78
        $region18: #{qnet_duel_forward.1} parent=11 // pred_check_branch
          %134 = sbr.rel (%p132) target = $region20
        $region19: #{qnet_duel_forward.1} parent=11 // pred_region
          _
        $region20: #{qnet_duel_forward.1} parent=11 // pred_fallthru
          _
      $region12: #{qnet_duel_forward.1} parent=5 // pred_fallthru
        _
      %p135 = scmp.lt.s32.totalorder %s10, 2
      // Predicated region
      $region21: #{qnet_duel_forward.1} parent=5 // pred_check
        %p136 = pneg %p135
      $region22: #{qnet_duel_forward.1} parent=5 // pred_check_branch
        %138 = sbr.rel (%p136) target = $region24
      $region23: #{qnet_duel_forward.1} parent=5 // pred_region
        // Predicated region
        $region25: #{qnet_duel_forward.1} parent=23 // pred_check
          %p139 = pneg %p30
        $region26: #{qnet_duel_forward.1} parent=23 // pred_check_branch
          %141 = sbr.rel (%p139) target = $region28
        $region27: #{qnet_duel_forward.1} parent=23 // pred_region
          %s142 = smul.u32 16, %s10
          %p143 = scmp.lt.s32.totalorder %s142, 31
          %s144 = scalar_select %p143, %s142, 31
          %s145 = smul.addr %s144, 8
          %s146 = scalar_lea.vmem %s0, %s145
          %s147 = smul.u32 16, %s10
        $region28: #{qnet_duel_forward.1} parent=23 // pred_fallthru
          _
      $region24: #{qnet_duel_forward.1} parent=5 // pred_fallthru
        _
      %p148 = scmp.le.s32.totalorder 1, %s10
      %p149 = scmp.lt.s32.totalorder %s10, 3
      %p150 = pnand %p148, %p149
      %p151 = pneg %p150
      // Predicated region
      $region29: #{qnet_duel_forward.1} parent=5 // pred_check
        _
      $region30: #{qnet_duel_forward.1} parent=5 // pred_check_branch
        %153 = sbr.rel (%p150) target = $region32
      $region31: #{qnet_duel_forward.1} parent=5 // pred_region
        %s154 = ssub.s32 %s10, 1
        // Predicated region
        $region33: #{qnet_duel_forward.1} parent=31 // pred_check
          %p155 = pneg %p57
        $region34: #{qnet_duel_forward.1} parent=31 // pred_check_branch
          %157 = sbr.rel (%p155) target = $region36
        $region35: #{qnet_duel_forward.1} parent=31 // pred_region
          %158 = dma.done [#allocation3], 6400
        $region36: #{qnet_duel_forward.1} parent=31 // pred_fallthru
          _
        %s159 = smul.u32 16, %s15
        %p160 = scmp.lt.s32.totalorder %s159, 31
        %s161 = scalar_select %p160, %s159, 31
        %s162 = smul.addr %s161, 8
        %s163 = scalar_lea.vmem %s0, %s162
        %p164 = pneg %p36
        %p165 = pneg %p33
        %p166 = pneg %p57
        %p167 = pneg %p54
        %p168 = pneg %p78
        %p169 = pneg %p75
        %p170 = pneg %p104
        %p171 = pneg %p101
        %s172 = smul.u32 16, %s15
        %p173 = scmp.lt.s32.totalorder %s172, 31
        %s174 = scalar_select %p173, %s172, 31
        %s175 = smul.addr %s174, 8
        %s176 = scalar_lea.vmem %s3, %s175
        %s177 = smul.u32 16, %s15
        %p178 = scmp.lt.s32.totalorder %s177, 31
        %s179 = scalar_select %p178, %s177, 31
        %s180 = smul.addr %s179, 8
        %s181 = scalar_lea.vmem %s0, %s180
        %s182 = smul.u32 16, %s15
        %s183 = smul.u32 16, %s15
        %p184 = scmp.lt.s32.totalorder %s183, 31
        %s185 = scalar_select %p184, %s183, 31
        %s186 = smul.addr %s185, 8
        %s187 = scalar_lea.vmem %s3, %s186
        %s188 = smul.u32 16, %s15
        %v189 = vld [vmem:[%s181] sm:$0xff]
        %v190 = vld [vmem:[%s181 + $0x8] sm:$0xff]
        %v191 = vld [vmem:[%s181 + $0x10] sm:$0xff]
        %v192 = vld [vmem:[%s181 + $0x18] sm:$0xff]
        %v193 = vld [vmem:[%s181 + $0x20] sm:$0xff]
        %v194 = vld [vmem:[%s181 + $0x28] sm:$0xff]
        %v195 = vld [vmem:[%s181 + $0x30] sm:$0xff]
        %v196 = vld [vmem:[%s181 + $0x38] sm:$0xff]
        %v197 = vld [vmem:[%s181 + $0x40] sm:$0xff]
        %v198 = vld [vmem:[%s181 + $0x48] sm:$0xff]
        %v199 = vld [vmem:[%s181 + $0x50] sm:$0xff]
        %v200 = vld [vmem:[%s181 + $0x58] sm:$0xff]
        %v201 = vld [vmem:[%s181 + $0x60] sm:$0xff]
        %v202 = vld [vmem:[%s181 + $0x68] sm:$0xff]
        %v203 = vld [vmem:[%s181 + $0x70] sm:$0xff]
        %v204 = vld [vmem:[%s181 + $0x78] sm:$0xff]
        %v205 = vld [vmem:[#allocation2] sm:$0xff]
        %v206 = vld [vmem:[#allocation2 + $0x8] sm:$0xff]
        %v207 = vld [vmem:[%s2] sm:$0x1]
        %v208 = vlaneseq
        %v209 = vshrl.u32 %v208, 7
        %v210 = vsub.s32 0, %v209
        %v211 = vrot.slane %v207, %v210
        %vm212 = vcmask 130048
        %v214 = vsel %vm212, %v189, 0
        %v217 = vsel %vm212, %v190, 0
        %v220 = vsel %vm212, %v191, 0
        %v223 = vsel %vm212, %v192, 0
        %v226 = vsel %vm212, %v193, 0
        %v229 = vsel %vm212, %v194, 0
        %v232 = vsel %vm212, %v195, 0
        %v235 = vsel %vm212, %v196, 0
        %v238 = vsel %vm212, %v197, 0
        %v241 = vsel %vm212, %v198, 0
        %v244 = vsel %vm212, %v199, 0
        %v247 = vsel %vm212, %v200, 0
        %v250 = vsel %vm212, %v201, 0
        %v253 = vsel %vm212, %v202, 0
        %v256 = vsel %vm212, %v203, 0
        %v259 = vsel %vm212, %v204, 0
        %261 = vmatprep.subr.mxu0 0.0
        %262 = vmatpush1.msra.mxu0 %v205
        %263 = vmatprep.subr.mxu0 0.0
        %264 = vmatpush1.msra.mxu0 %v206
        %265 = vmatprep.subr.mxu0 0.0
        %266 = vmatpush1.msra.mxu0 0.0
        %267 = vmatprep.subr.mxu0 0.0
        %268 = vmatpush1.msra.mxu0 0.0
        %269 = vmatprep.subr.mxu0 0.0
        %270 = vmatpush1.msra.mxu0 0.0
        %271 = vmatprep.subr.mxu0 0.0
        %272 = vmatpush1.msra.mxu0 0.0
        %273 = vmatprep.subr.mxu0 0.0
        %274 = vmatpush1.msra.mxu0 0.0
        %275 = vmatprep.subr.mxu0 0.0
        %276 = vmatpush1.msra.mxu0 0.0
        %277 = vmatprep.subr.mxu0 0.0
        %278 = vmatpush1.msra.mxu0 0.0
        %279 = vmatprep.subr.mxu0 0.0
        %280 = vmatpush1.msra.mxu0 0.0
        %281 = vmatprep.subr.mxu0 0.0
        %282 = vmatpush1.msra.mxu0 0.0
        %283 = vmatprep.subr.mxu0 0.0
        %284 = vmatpush1.msra.mxu0 0.0
        %285 = vmatprep.subr.mxu0 0.0
        %286 = vmatpush1.msra.mxu0 0.0
        %287 = vmatprep.subr.mxu0 0.0
        %288 = vmatpush1.msra.mxu0 0.0
        %289 = vmatprep.subr.mxu0 0.0
        %290 = vmatpush1.msra.mxu0 0.0
        %291 = vmatprep.subr.mxu0 0.0
        %292 = vmatpush1.msra.mxu0 0.0
        %293 = vmatprep.subr.mxu0 0.0
        %294 = vmatpush1.msra.mxu0 0.0
        %295 = vmatprep.subr.mxu0 0.0
        %296 = vmatpush1.msra.mxu0 0.0
        %297 = vmatprep.subr.mxu0 0.0
        %298 = vmatpush1.msra.mxu0 0.0
        %299 = vmatprep.subr.mxu0 0.0
        %300 = vmatpush1.msra.mxu0 0.0
        %301 = vmatprep.subr.mxu0 0.0
        %302 = vmatpush1.msra.mxu0 0.0
        %303 = vmatprep.subr.mxu0 0.0
        %304 = vmatpush1.msra.mxu0 0.0
        %305 = vmatprep.subr.mxu0 0.0
        %306 = vmatpush1.msra.mxu0 0.0
        %307 = vmatprep.subr.mxu0 0.0
        %308 = vmatpush1.msra.mxu0 0.0
        %309 = vmatprep.subr.mxu0 0.0
        %310 = vmatpush1.msra.mxu0 0.0
        %311 = vmatprep.subr.mxu0 0.0
        %312 = vmatpush1.msra.mxu0 0.0
        %313 = vmatprep.subr.mxu0 0.0
        %314 = vmatpush1.msra.mxu0 0.0
        %315 = vmatprep.subr.mxu0 0.0
        %316 = vmatpush1.msra.mxu0 0.0
        %317 = vmatprep.subr.mxu0 0.0
        %318 = vmatpush1.msra.mxu0 0.0
        %319 = vmatprep.subr.mxu0 0.0
        %320 = vmatpush1.msra.mxu0 0.0
        %321 = vmatprep.subr.mxu0 0.0
        %322 = vmatpush1.msra.mxu0 0.0
        %323 = vmatprep.subr.mxu0 0.0
        %324 = vmatpush1.msra.mxu0 0.0
        %325 = vmatprep.mubr.f32.mxu0 0.0
        %326 = vmatmul.mubr.f32.gmra.mrb[0].mxu0 %v214
        %v327 = vpop.f32.mrb[0].mxu0
        %v328 = vadd.f32 %v211, %v327
        %v329 = vpop.f32.mrb[0].mxu0
        %330 = vmatprep.mubr.f32.mxu0 0.0
        %331 = vmatmul.mubr.f32.gmra.mrb[0].mxu0 %v217
        %v332 = vpop.f32.mrb[0].mxu0
        %v333 = vadd.f32 %v211, %v332
        %v334 = vpop.f32.mrb[0].mxu0
        %335 = vmatprep.mubr.f32.mxu0 0.0
        %336 = vmatmul.mubr.f32.gmra.mrb[0].mxu0 %v220
        %v337 = vpop.f32.mrb[0].mxu0
        %v338 = vadd.f32 %v211, %v337
        %v339 = vpop.f32.mrb[0].mxu0
        %340 = vmatprep.mubr.f32.mxu0 0.0
        %341 = vmatmul.mubr.f32.gmra.mrb[0].mxu0 %v223
        %v342 = vpop.f32.mrb[0].mxu0
        %v343 = vadd.f32 %v211, %v342
        %v344 = vpop.f32.mrb[0].mxu0
        %345 = vmatprep.mubr.f32.mxu0 0.0
        %346 = vmatmul.mubr.f32.gmra.mrb[0].mxu0 %v226
        %v347 = vpop.f32.mrb[0].mxu0
        %v348 = vadd.f32 %v211, %v347
        %v349 = vpop.f32.mrb[0].mxu0
        %350 = vmatprep.mubr.f32.mxu0 0.0
        %351 = vmatmul.mubr.f32.gmra.mrb[0].mxu0 %v229
        %v352 = vpop.f32.mrb[0].mxu0
        %v353 = vadd.f32 %v211, %v352
        %v354 = vpop.f32.mrb[0].mxu0
        %355 = vmatprep.mubr.f32.mxu0 0.0
        %356 = vmatmul.mubr.f32.gmra.mrb[0].mxu0 %v232
        %v357 = vpop.f32.mrb[0].mxu0
        %v358 = vadd.f32 %v211, %v357
        %v359 = vpop.f32.mrb[0].mxu0
        %360 = vmatprep.mubr.f32.mxu0 0.0
        %361 = vmatmul.mubr.f32.gmra.mrb[0].mxu0 %v235
        %v362 = vpop.f32.mrb[0].mxu0
        %v363 = vadd.f32 %v211, %v362
        %v364 = vpop.f32.mrb[0].mxu0
        %365 = vmatprep.mubr.f32.mxu0 0.0
        %366 = vmatmul.mubr.f32.gmra.mrb[0].mxu0 %v238
        %v367 = vpop.f32.mrb[0].mxu0
        %v368 = vadd.f32 %v211, %v367
        %v369 = vpop.f32.mrb[0].mxu0
        %370 = vmatprep.mubr.f32.mxu0 0.0
        %371 = vmatmul.mubr.f32.gmra.mrb[0].mxu0 %v241
        %v372 = vpop.f32.mrb[0].mxu0
        %v373 = vadd.f32 %v211, %v372
        %v374 = vpop.f32.mrb[0].mxu0
        %375 = vmatprep.mubr.f32.mxu0 0.0
        %376 = vmatmul.mubr.f32.gmra.mrb[0].mxu0 %v244
        %v377 = vpop.f32.mrb[0].mxu0
        %v378 = vadd.f32 %v211, %v377
        %v379 = vpop.f32.mrb[0].mxu0
        %380 = vmatprep.mubr.f32.mxu0 0.0
        %381 = vmatmul.mubr.f32.gmra.mrb[0].mxu0 %v247
        %v382 = vpop.f32.mrb[0].mxu0
        %v383 = vadd.f32 %v211, %v382
        %v384 = vpop.f32.mrb[0].mxu0
        %385 = vmatprep.mubr.f32.mxu0 0.0
        %386 = vmatmul.mubr.f32.gmra.mrb[0].mxu0 %v250
        %v387 = vpop.f32.mrb[0].mxu0
        %v388 = vadd.f32 %v211, %v387
        %v389 = vpop.f32.mrb[0].mxu0
        %390 = vmatprep.mubr.f32.mxu0 0.0
        %391 = vmatmul.mubr.f32.gmra.mrb[0].mxu0 %v253
        %v392 = vpop.f32.mrb[0].mxu0
        %v393 = vadd.f32 %v211, %v392
        %v394 = vpop.f32.mrb[0].mxu0
        %395 = vmatprep.mubr.f32.mxu0 0.0
        %396 = vmatmul.mubr.f32.gmra.mrb[0].mxu0 %v256
        %v397 = vpop.f32.mrb[0].mxu0
        %v398 = vadd.f32 %v211, %v397
        %v399 = vpop.f32.mrb[0].mxu0
        %400 = vmatprep.mubr.f32.mxu0 0.0
        %401 = vmatmul.mubr.f32.gmra.mrb[0].mxu0 %v259
        %v402 = vpop.f32.mrb[0].mxu0
        %v403 = vadd.f32 %v211, %v402
        %v404 = vpop.f32.mrb[0].mxu0
        %405 = vdwg.mxu0
        %v406 = vmax.f32 %v328, 0.0
        %v407 = vmax.f32 %v333, 0.0
        %v408 = vmax.f32 %v338, 0.0
        %v409 = vmax.f32 %v343, 0.0
        %v410 = vmax.f32 %v348, 0.0
        %v411 = vmax.f32 %v353, 0.0
        %v412 = vmax.f32 %v358, 0.0
        %v413 = vmax.f32 %v363, 0.0
        %v414 = vmax.f32 %v368, 0.0
        %v415 = vmax.f32 %v373, 0.0
        %v416 = vmax.f32 %v378, 0.0
        %v417 = vmax.f32 %v383, 0.0
        %v418 = vmax.f32 %v388, 0.0
        %v419 = vmax.f32 %v393, 0.0
        %v420 = vmax.f32 %v398, 0.0
        %v421 = vmax.f32 %v403, 0.0
        %v422 = vld [vmem:[#allocation2 + $0x10] sm:$0xff]
        %v423 = vld [vmem:[#allocation2 + $0x18] sm:$0xff]
        %v424 = vld [vmem:[#allocation2 + $0x20] sm:$0xff]
        %v425 = vld [vmem:[#allocation2 + $0x28] sm:$0xff]
        %v426 = vld [vmem:[#allocation2 + $0x30] sm:$0xff]
        %v427 = vld [vmem:[#allocation2 + $0x38] sm:$0xff]
        %v428 = vld [vmem:[#allocation2 + $0x40] sm:$0xff]
        %v429 = vld [vmem:[#allocation2 + $0x48] sm:$0xff]
        %v430 = vld [vmem:[#allocation2 + $0x50] sm:$0xff]
        %v431 = vld [vmem:[#allocation2 + $0x58] sm:$0xff]
        %v432 = vld [vmem:[#allocation2 + $0x60] sm:$0xff]
        %v433 = vld [vmem:[#allocation2 + $0x68] sm:$0xff]
        %v434 = vld [vmem:[#allocation2 + $0x70] sm:$0xff]
        %v435 = vld [vmem:[#allocation2 + $0x78] sm:$0xff]
        %v436 = vld [vmem:[#allocation2 + $0x80] sm:$0xff]
        %v437 = vld [vmem:[#allocation2 + $0x88] sm:$0xff]
        %v438 = vld [vmem:[%s2 + $0x1] sm:$0x1]
        %v439 = vlaneseq
        %v440 = vshrl.u32 %v439, 7
        %v441 = vsub.s32 0, %v440
        %v442 = vrot.slane %v438, %v441
        %443 = vmatprep.subr.mxu0 0.0
        %444 = vmatpush1.msra.mxu0 %v422
        %445 = vmatprep.subr.mxu0 0.0
        %446 = vmatpush1.msra.mxu0 %v423
        %447 = vmatprep.subr.mxu0 0.0
        %448 = vmatpush1.msra.mxu0 %v424
        %449 = vmatprep.subr.mxu0 0.0
        %450 = vmatpush1.msra.mxu0 %v425
        %451 = vmatprep.subr.mxu0 0.0
        %452 = vmatpush1.msra.mxu0 %v426
        %453 = vmatprep.subr.mxu0 0.0
        %454 = vmatpush1.msra.mxu0 %v427
        %455 = vmatprep.subr.mxu0 0.0
        %456 = vmatpush1.msra.mxu0 %v428
        %457 = vmatprep.subr.mxu0 0.0
        %458 = vmatpush1.msra.mxu0 %v429
        %459 = vmatprep.subr.mxu0 0.0
        %460 = vmatpush1.msra.mxu0 %v430
        %461 = vmatprep.subr.mxu0 0.0
        %462 = vmatpush1.msra.mxu0 %v431
        %463 = vmatprep.subr.mxu0 0.0
        %464 = vmatpush1.msra.mxu0 %v432
        %465 = vmatprep.subr.mxu0 0.0
        %466 = vmatpush1.msra.mxu0 %v433
        %467 = vmatprep.subr.mxu0 0.0
        %468 = vmatpush1.msra.mxu0 %v434
        %469 = vmatprep.subr.mxu0 0.0
        %470 = vmatpush1.msra.mxu0 %v435
        %471 = vmatprep.subr.mxu0 0.0
        %472 = vmatpush1.msra.mxu0 %v436
        %473 = vmatprep.subr.mxu0 0.0
        %474 = vmatpush1.msra.mxu0 %v437
        %475 = vmatprep.subr.mxu0 0.0
        %476 = vmatpush1.msra.mxu0 0.0
        %477 = vmatprep.subr.mxu0 0.0
        %478 = vmatpush1.msra.mxu0 0.0
        %479 = vmatprep.subr.mxu0 0.0
        %480 = vmatpush1.msra.mxu0 0.0
        %481 = vmatprep.subr.mxu0 0.0
        %482 = vmatpush1.msra.mxu0 0.0
        %483 = vmatprep.subr.mxu0 0.0
        %484 = vmatpush1.msra.mxu0 0.0
        %485 = vmatprep.subr.mxu0 0.0
        %486 = vmatpush1.msra.mxu0 0.0
        %487 = vmatprep.subr.mxu0 0.0
        %488 = vmatpush1.msra.mxu0 0.0
        %489 = vmatprep.subr.mxu0 0.0
        %490 = vmatpush1.msra.mxu0 0.0
        %491 = vmatprep.subr.mxu0 0.0
        %492 = vmatpush1.msra.mxu0 0.0
        %493 = vmatprep.subr.mxu0 0.0
        %494 = vmatpush1.msra.mxu0 0.0
        %495 = vmatprep.subr.mxu0 0.0
        %496 = vmatpush1.msra.mxu0 0.0
        %497 = vmatprep.subr.mxu0 0.0
        %498 = vmatpush1.msra.mxu0 0.0
        %499 = vmatprep.subr.mxu0 0.0
        %500 = vmatpush1.msra.mxu0 0.0
        %501 = vmatprep.subr.mxu0 0.0
        %502 = vmatpush1.msra.mxu0 0.0
        %503 = vmatprep.subr.mxu0 0.0
        %504 = vmatpush1.msra.mxu0 0.0
        %505 = vmatprep.subr.mxu0 0.0
        %506 = vmatpush1.msra.mxu0 0.0
        %507 = vmatprep.mubr.f32.mxu0 0.0
        %508 = vmatmul.mubr.f32.gmra.mrb[0].mxu0 %v406
        %v509 = vpop.f32.mrb[0].mxu0
        %v510 = vadd.f32 %v442, %v509
        %v511 = vpop.f32.mrb[0].mxu0
        %512 = vmatprep.mubr.f32.mxu0 0.0
        %513 = vmatmul.mubr.f32.gmra.mrb[0].mxu0 %v407
        %v514 = vpop.f32.mrb[0].mxu0
        %v515 = vadd.f32 %v442, %v514
        %v516 = vpop.f32.mrb[0].mxu0
        %517 = vmatprep.mubr.f32.mxu0 0.0
        %518 = vmatmul.mubr.f32.gmra.mrb[0].mxu0 %v408
        %v519 = vpop.f32.mrb[0].mxu0
        %v520 = vadd.f32 %v442, %v519
        %v521 = vpop.f32.mrb[0].mxu0
        %522 = vmatprep.mubr.f32.mxu0 0.0
        %523 = vmatmul.mubr.f32.gmra.mrb[0].mxu0 %v409
        %v524 = vpop.f32.mrb[0].mxu0
        %v525 = vadd.f32 %v442, %v524
        %v526 = vpop.f32.mrb[0].mxu0
        %527 = vmatprep.mubr.f32.mxu0 0.0
        %528 = vmatmul.mubr.f32.gmra.mrb[0].mxu0 %v410
        %v529 = vpop.f32.mrb[0].mxu0
        %v530 = vadd.f32 %v442, %v529
        %v531 = vpop.f32.mrb[0].mxu0
        %532 = vmatprep.mubr.f32.mxu0 0.0
        %533 = vmatmul.mubr.f32.gmra.mrb[0].mxu0 %v411
        %v534 = vpop.f32.mrb[0].mxu0
        %v535 = vadd.f32 %v442, %v534
        %v536 = vpop.f32.mrb[0].mxu0
        %537 = vmatprep.mubr.f32.mxu0 0.0
        %538 = vmatmul.mubr.f32.gmra.mrb[0].mxu0 %v412
        %v539 = vpop.f32.mrb[0].mxu0
        %v540 = vadd.f32 %v442, %v539
        %v541 = vpop.f32.mrb[0].mxu0
        %542 = vmatprep.mubr.f32.mxu0 0.0
        %543 = vmatmul.mubr.f32.gmra.mrb[0].mxu0 %v413
        %v544 = vpop.f32.mrb[0].mxu0
        %v545 = vadd.f32 %v442, %v544
        %v546 = vpop.f32.mrb[0].mxu0
        %547 = vmatprep.mubr.f32.mxu0 0.0
        %548 = vmatmul.mubr.f32.gmra.mrb[0].mxu0 %v414
        %v549 = vpop.f32.mrb[0].mxu0
        %v550 = vadd.f32 %v442, %v549
        %v551 = vpop.f32.mrb[0].mxu0
        %552 = vmatprep.mubr.f32.mxu0 0.0
        %553 = vmatmul.mubr.f32.gmra.mrb[0].mxu0 %v415
        %v554 = vpop.f32.mrb[0].mxu0
        %v555 = vadd.f32 %v442, %v554
        %v556 = vpop.f32.mrb[0].mxu0
        %557 = vmatprep.mubr.f32.mxu0 0.0
        %558 = vmatmul.mubr.f32.gmra.mrb[0].mxu0 %v416
        %v559 = vpop.f32.mrb[0].mxu0
        %v560 = vadd.f32 %v442, %v559
        %v561 = vpop.f32.mrb[0].mxu0
        %562 = vmatprep.mubr.f32.mxu0 0.0
        %563 = vmatmul.mubr.f32.gmra.mrb[0].mxu0 %v417
        %v564 = vpop.f32.mrb[0].mxu0
        %v565 = vadd.f32 %v442, %v564
        %v566 = vpop.f32.mrb[0].mxu0
        %567 = vmatprep.mubr.f32.mxu0 0.0
        %568 = vmatmul.mubr.f32.gmra.mrb[0].mxu0 %v418
        %v569 = vpop.f32.mrb[0].mxu0
        %v570 = vadd.f32 %v442, %v569
        %v571 = vpop.f32.mrb[0].mxu0
        %572 = vmatprep.mubr.f32.mxu0 0.0
        %573 = vmatmul.mubr.f32.gmra.mrb[0].mxu0 %v419
        %v574 = vpop.f32.mrb[0].mxu0
        %v575 = vadd.f32 %v442, %v574
        %v576 = vpop.f32.mrb[0].mxu0
        %577 = vmatprep.mubr.f32.mxu0 0.0
        %578 = vmatmul.mubr.f32.gmra.mrb[0].mxu0 %v420
        %v579 = vpop.f32.mrb[0].mxu0
        %v580 = vadd.f32 %v442, %v579
        %v581 = vpop.f32.mrb[0].mxu0
        %582 = vmatprep.mubr.f32.mxu0 0.0
        %583 = vmatmul.mubr.f32.gmra.mrb[0].mxu0 %v421
        %v584 = vpop.f32.mrb[0].mxu0
        %v585 = vadd.f32 %v442, %v584
        %v586 = vpop.f32.mrb[0].mxu0
        %587 = vdwg.mxu0
        %v588 = vmax.f32 %v510, 0.0
        %v589 = vmax.f32 %v515, 0.0
        %v590 = vmax.f32 %v520, 0.0
        %v591 = vmax.f32 %v525, 0.0
        %v592 = vmax.f32 %v530, 0.0
        %v593 = vmax.f32 %v535, 0.0
        %v594 = vmax.f32 %v540, 0.0
        %v595 = vmax.f32 %v545, 0.0
        %v596 = vmax.f32 %v550, 0.0
        %v597 = vmax.f32 %v555, 0.0
        %v598 = vmax.f32 %v560, 0.0
        %v599 = vmax.f32 %v565, 0.0
        %v600 = vmax.f32 %v570, 0.0
        %v601 = vmax.f32 %v575, 0.0
        %v602 = vmax.f32 %v580, 0.0
        %v603 = vmax.f32 %v585, 0.0
        %v604 = vld [vmem:[#allocation2 + $0x90] sm:$0xff]
        %v605 = vld [vmem:[#allocation2 + $0x98] sm:$0xff]
        %v606 = vld [vmem:[#allocation2 + $0xa0] sm:$0xff]
        %v607 = vld [vmem:[#allocation2 + $0xa8] sm:$0xff]
        %v608 = vld [vmem:[#allocation2 + $0xb0] sm:$0xff]
        %v609 = vld [vmem:[#allocation2 + $0xb8] sm:$0xff]
        %v610 = vld [vmem:[#allocation2 + $0xc0] sm:$0xff]
        %v611 = vld [vmem:[#allocation2 + $0xc8] sm:$0xff]
        %v612 = vld [vmem:[#allocation2 + $0xd0] sm:$0xff]
        %v613 = vld [vmem:[#allocation2 + $0xd8] sm:$0xff]
        %v614 = vld [vmem:[#allocation2 + $0xe0] sm:$0xff]
        %v615 = vld [vmem:[#allocation2 + $0xe8] sm:$0xff]
        %v616 = vld [vmem:[#allocation2 + $0xf0] sm:$0xff]
        %v617 = vld [vmem:[#allocation2 + $0xf8] sm:$0xff]
        %v618 = vld [vmem:[#allocation2 + $0x100] sm:$0xff]
        %v619 = vld [vmem:[#allocation2 + $0x108] sm:$0xff]
        %v620 = vld [vmem:[%s2 + $0x2] sm:$0x1]
        %v621 = vlaneseq
        %v622 = vshrl.u32 %v621, 7
        %v623 = vsub.s32 0, %v622
        %v624 = vrot.slane %v620, %v623
        %625 = vmatprep.subr.mxu0 0.0
        %626 = vmatpush1.msra.mxu0 %v604
        %627 = vmatprep.subr.mxu0 0.0
        %628 = vmatpush1.msra.mxu0 %v605
        %629 = vmatprep.subr.mxu0 0.0
        %630 = vmatpush1.msra.mxu0 %v606
        %631 = vmatprep.subr.mxu0 0.0
        %632 = vmatpush1.msra.mxu0 %v607
        %633 = vmatprep.subr.mxu0 0.0
        %634 = vmatpush1.msra.mxu0 %v608
        %635 = vmatprep.subr.mxu0 0.0
        %636 = vmatpush1.msra.mxu0 %v609
        %637 = vmatprep.subr.mxu0 0.0
        %638 = vmatpush1.msra.mxu0 %v610
        %639 = vmatprep.subr.mxu0 0.0
        %640 = vmatpush1.msra.mxu0 %v611
        %641 = vmatprep.subr.mxu0 0.0
        %642 = vmatpush1.msra.mxu0 %v612
        %643 = vmatprep.subr.mxu0 0.0
        %644 = vmatpush1.msra.mxu0 %v613
        %645 = vmatprep.subr.mxu0 0.0
        %646 = vmatpush1.msra.mxu0 %v614
        %647 = vmatprep.subr.mxu0 0.0
        %648 = vmatpush1.msra.mxu0 %v615
        %649 = vmatprep.subr.mxu0 0.0
        %650 = vmatpush1.msra.mxu0 %v616
        %651 = vmatprep.subr.mxu0 0.0
        %652 = vmatpush1.msra.mxu0 %v617
        %653 = vmatprep.subr.mxu0 0.0
        %654 = vmatpush1.msra.mxu0 %v618
        %655 = vmatprep.subr.mxu0 0.0
        %656 = vmatpush1.msra.mxu0 %v619
        %657 = vmatprep.subr.mxu0 0.0
        %658 = vmatpush1.msra.mxu0 0.0
        %659 = vmatprep.subr.mxu0 0.0
        %660 = vmatpush1.msra.mxu0 0.0
        %661 = vmatprep.subr.mxu0 0.0
        %662 = vmatpush1.msra.mxu0 0.0
        %663 = vmatprep.subr.mxu0 0.0
        %664 = vmatpush1.msra.mxu0 0.0
        %665 = vmatprep.subr.mxu0 0.0
        %666 = vmatpush1.msra.mxu0 0.0
        %667 = vmatprep.subr.mxu0 0.0
        %668 = vmatpush1.msra.mxu0 0.0
        %669 = vmatprep.subr.mxu0 0.0
        %670 = vmatpush1.msra.mxu0 0.0
        %671 = vmatprep.subr.mxu0 0.0
        %672 = vmatpush1.msra.mxu0 0.0
        %673 = vmatprep.subr.mxu0 0.0
        %674 = vmatpush1.msra.mxu0 0.0
        %675 = vmatprep.subr.mxu0 0.0
        %676 = vmatpush1.msra.mxu0 0.0
        %677 = vmatprep.subr.mxu0 0.0
        %678 = vmatpush1.msra.mxu0 0.0
        %679 = vmatprep.subr.mxu0 0.0
        %680 = vmatpush1.msra.mxu0 0.0
        %681 = vmatprep.subr.mxu0 0.0
        %682 = vmatpush1.msra.mxu0 0.0
        %683 = vmatprep.subr.mxu0 0.0
        %684 = vmatpush1.msra.mxu0 0.0
        %685 = vmatprep.subr.mxu0 0.0
        %686 = vmatpush1.msra.mxu0 0.0
        %687 = vmatprep.subr.mxu0 0.0
        %688 = vmatpush1.msra.mxu0 0.0
        %689 = vmatprep.mubr.f32.mxu0 0.0
        %690 = vmatmul.mubr.f32.gmra.mrb[0].mxu0 %v588
        %v691 = vpop.f32.mrb[0].mxu0
        %v692 = vadd.f32 %v624, %v691
        %v693 = vpop.f32.mrb[0].mxu0
        %694 = vmatprep.mubr.f32.mxu0 0.0
        %695 = vmatmul.mubr.f32.gmra.mrb[0].mxu0 %v589
        %v696 = vpop.f32.mrb[0].mxu0
        %v697 = vadd.f32 %v624, %v696
        %v698 = vpop.f32.mrb[0].mxu0
        %699 = vmatprep.mubr.f32.mxu0 0.0
        %700 = vmatmul.mubr.f32.gmra.mrb[0].mxu0 %v590
        %v701 = vpop.f32.mrb[0].mxu0
        %v702 = vadd.f32 %v624, %v701
        %v703 = vpop.f32.mrb[0].mxu0
        %704 = vmatprep.mubr.f32.mxu0 0.0
        %705 = vmatmul.mubr.f32.gmra.mrb[0].mxu0 %v591
        %v706 = vpop.f32.mrb[0].mxu0
        %v707 = vadd.f32 %v624, %v706
        %v708 = vpop.f32.mrb[0].mxu0
        %709 = vmatprep.mubr.f32.mxu0 0.0
        %710 = vmatmul.mubr.f32.gmra.mrb[0].mxu0 %v592
        %v711 = vpop.f32.mrb[0].mxu0
        %v712 = vadd.f32 %v624, %v711
        %v713 = vpop.f32.mrb[0].mxu0
        %714 = vmatprep.mubr.f32.mxu0 0.0
        %715 = vmatmul.mubr.f32.gmra.mrb[0].mxu0 %v593
        %v716 = vpop.f32.mrb[0].mxu0
        %v717 = vadd.f32 %v624, %v716
        %v718 = vpop.f32.mrb[0].mxu0
        %719 = vmatprep.mubr.f32.mxu0 0.0
        %720 = vmatmul.mubr.f32.gmra.mrb[0].mxu0 %v594
        %v721 = vpop.f32.mrb[0].mxu0
        %v722 = vadd.f32 %v624, %v721
        %v723 = vpop.f32.mrb[0].mxu0
        %724 = vmatprep.mubr.f32.mxu0 0.0
        %725 = vmatmul.mubr.f32.gmra.mrb[0].mxu0 %v595
        %v726 = vpop.f32.mrb[0].mxu0
        %v727 = vadd.f32 %v624, %v726
        %v728 = vpop.f32.mrb[0].mxu0
        %729 = vmatprep.mubr.f32.mxu0 0.0
        %730 = vmatmul.mubr.f32.gmra.mrb[0].mxu0 %v596
        %v731 = vpop.f32.mrb[0].mxu0
        %v732 = vadd.f32 %v624, %v731
        %v733 = vpop.f32.mrb[0].mxu0
        %734 = vmatprep.mubr.f32.mxu0 0.0
        %735 = vmatmul.mubr.f32.gmra.mrb[0].mxu0 %v597
        %v736 = vpop.f32.mrb[0].mxu0
        %v737 = vadd.f32 %v624, %v736
        %v738 = vpop.f32.mrb[0].mxu0
        %739 = vmatprep.mubr.f32.mxu0 0.0
        %740 = vmatmul.mubr.f32.gmra.mrb[0].mxu0 %v598
        %v741 = vpop.f32.mrb[0].mxu0
        %v742 = vadd.f32 %v624, %v741
        %v743 = vpop.f32.mrb[0].mxu0
        %744 = vmatprep.mubr.f32.mxu0 0.0
        %745 = vmatmul.mubr.f32.gmra.mrb[0].mxu0 %v599
        %v746 = vpop.f32.mrb[0].mxu0
        %v747 = vadd.f32 %v624, %v746
        %v748 = vpop.f32.mrb[0].mxu0
        %749 = vmatprep.mubr.f32.mxu0 0.0
        %750 = vmatmul.mubr.f32.gmra.mrb[0].mxu0 %v600
        %v751 = vpop.f32.mrb[0].mxu0
        %v752 = vadd.f32 %v624, %v751
        %v753 = vpop.f32.mrb[0].mxu0
        %754 = vmatprep.mubr.f32.mxu0 0.0
        %755 = vmatmul.mubr.f32.gmra.mrb[0].mxu0 %v601
        %v756 = vpop.f32.mrb[0].mxu0
        %v757 = vadd.f32 %v624, %v756
        %v758 = vpop.f32.mrb[0].mxu0
        %759 = vmatprep.mubr.f32.mxu0 0.0
        %760 = vmatmul.mubr.f32.gmra.mrb[0].mxu0 %v602
        %v761 = vpop.f32.mrb[0].mxu0
        %v762 = vadd.f32 %v624, %v761
        %v763 = vpop.f32.mrb[0].mxu0
        %764 = vmatprep.mubr.f32.mxu0 0.0
        %765 = vmatmul.mubr.f32.gmra.mrb[0].mxu0 %v603
        %v766 = vpop.f32.mrb[0].mxu0
        %v767 = vadd.f32 %v624, %v766
        %v768 = vpop.f32.mrb[0].mxu0
        %769 = vdwg.mxu0
        %v770 = vmax.f32 %v692, 0.0
        %v771 = vmax.f32 %v697, 0.0
        %v772 = vmax.f32 %v702, 0.0
        %v773 = vmax.f32 %v707, 0.0
        %v774 = vmax.f32 %v712, 0.0
        %v775 = vmax.f32 %v717, 0.0
        %v776 = vmax.f32 %v722, 0.0
        %v777 = vmax.f32 %v727, 0.0
        %v778 = vmax.f32 %v732, 0.0
        %v779 = vmax.f32 %v737, 0.0
        %v780 = vmax.f32 %v742, 0.0
        %v781 = vmax.f32 %v747, 0.0
        %v782 = vmax.f32 %v752, 0.0
        %v783 = vmax.f32 %v757, 0.0
        %v784 = vmax.f32 %v762, 0.0
        %v785 = vmax.f32 %v767, 0.0
        %v786 = vld [vmem:[#allocation2 + $0x110] sm:$0xff]
        %v787 = vld [vmem:[#allocation2 + $0x118] sm:$0xff]
        %v788 = vld [vmem:[#allocation2 + $0x120] sm:$0xff]
        %v789 = vld [vmem:[#allocation2 + $0x128] sm:$0xff]
        %v790 = vld [vmem:[#allocation2 + $0x130] sm:$0xff]
        %v791 = vld [vmem:[#allocation2 + $0x138] sm:$0xff]
        %v792 = vld [vmem:[#allocation2 + $0x140] sm:$0xff]
        %v793 = vld [vmem:[#allocation2 + $0x148] sm:$0xff]
        %v794 = vld [vmem:[#allocation2 + $0x150] sm:$0xff]
        %v795 = vld [vmem:[#allocation2 + $0x158] sm:$0xff]
        %v796 = vld [vmem:[#allocation2 + $0x160] sm:$0xff]
        %v797 = vld [vmem:[#allocation2 + $0x168] sm:$0xff]
        %v798 = vld [vmem:[#allocation2 + $0x170] sm:$0xff]
        %v799 = vld [vmem:[#allocation2 + $0x178] sm:$0xff]
        %v800 = vld [vmem:[#allocation2 + $0x180] sm:$0xff]
        %v801 = vld [vmem:[#allocation2 + $0x188] sm:$0xff]
        %v802 = vld [vmem:[%s2 + $0x3] sm:$0x1]
        %v803 = vlaneseq
        %v804 = vshrl.u32 %v803, 7
        %v805 = vsub.s32 0, %v804
        %v806 = vrot.slane %v802, %v805
        %807 = vmatprep.subr.mxu0 0.0
        %808 = vmatpush1.msra.mxu0 %v786
        %809 = vmatprep.subr.mxu0 0.0
        %810 = vmatpush1.msra.mxu0 %v787
        %811 = vmatprep.subr.mxu0 0.0
        %812 = vmatpush1.msra.mxu0 %v788
        %813 = vmatprep.subr.mxu0 0.0
        %814 = vmatpush1.msra.mxu0 %v789
        %815 = vmatprep.subr.mxu0 0.0
        %816 = vmatpush1.msra.mxu0 %v790
        %817 = vmatprep.subr.mxu0 0.0
        %818 = vmatpush1.msra.mxu0 %v791
        %819 = vmatprep.subr.mxu0 0.0
        %820 = vmatpush1.msra.mxu0 %v792
        %821 = vmatprep.subr.mxu0 0.0
        %822 = vmatpush1.msra.mxu0 %v793
        %823 = vmatprep.subr.mxu0 0.0
        %824 = vmatpush1.msra.mxu0 %v794
        %825 = vmatprep.subr.mxu0 0.0
        %826 = vmatpush1.msra.mxu0 %v795
        %827 = vmatprep.subr.mxu0 0.0
        %828 = vmatpush1.msra.mxu0 %v796
        %829 = vmatprep.subr.mxu0 0.0
        %830 = vmatpush1.msra.mxu0 %v797
        %831 = vmatprep.subr.mxu0 0.0
        %832 = vmatpush1.msra.mxu0 %v798
        %833 = vmatprep.subr.mxu0 0.0
        %834 = vmatpush1.msra.mxu0 %v799
        %835 = vmatprep.subr.mxu0 0.0
        %836 = vmatpush1.msra.mxu0 %v800
        %837 = vmatprep.subr.mxu0 0.0
        %838 = vmatpush1.msra.mxu0 %v801
        %839 = vmatprep.subr.mxu0 0.0
        %840 = vmatpush1.msra.mxu0 0.0
        %841 = vmatprep.subr.mxu0 0.0
        %842 = vmatpush1.msra.mxu0 0.0
        %843 = vmatprep.subr.mxu0 0.0
        %844 = vmatpush1.msra.mxu0 0.0
        %845 = vmatprep.subr.mxu0 0.0
        %846 = vmatpush1.msra.mxu0 0.0
        %847 = vmatprep.subr.mxu0 0.0
        %848 = vmatpush1.msra.mxu0 0.0
        %849 = vmatprep.subr.mxu0 0.0
        %850 = vmatpush1.msra.mxu0 0.0
        %851 = vmatprep.subr.mxu0 0.0
        %852 = vmatpush1.msra.mxu0 0.0
        %853 = vmatprep.subr.mxu0 0.0
        %854 = vmatpush1.msra.mxu0 0.0
        %855 = vmatprep.subr.mxu0 0.0
        %856 = vmatpush1.msra.mxu0 0.0
        %857 = vmatprep.subr.mxu0 0.0
        %858 = vmatpush1.msra.mxu0 0.0
        %859 = vmatprep.subr.mxu0 0.0
        %860 = vmatpush1.msra.mxu0 0.0
        %861 = vmatprep.subr.mxu0 0.0
        %862 = vmatpush1.msra.mxu0 0.0
        %863 = vmatprep.subr.mxu0 0.0
        %864 = vmatpush1.msra.mxu0 0.0
        %865 = vmatprep.subr.mxu0 0.0
        %866 = vmatpush1.msra.mxu0 0.0
        %867 = vmatprep.subr.mxu0 0.0
        %868 = vmatpush1.msra.mxu0 0.0
        %869 = vmatprep.subr.mxu0 0.0
        %870 = vmatpush1.msra.mxu0 0.0
        %871 = vmatprep.mubr.f32.mxu0 0.0
        %872 = vmatmul.mubr.f32.gmra.mrb[0].mxu0 %v770
        %v873 = vpop.f32.mrb[0].mxu0
        %v874 = vadd.f32 %v806, %v873
        %v875 = vpop.f32.mrb[0].mxu0
        %876 = vmatprep.mubr.f32.mxu0 0.0
        %877 = vmatmul.mubr.f32.gmra.mrb[0].mxu0 %v771
        %v878 = vpop.f32.mrb[0].mxu0
        %v879 = vadd.f32 %v806, %v878
        %v880 = vpop.f32.mrb[0].mxu0
        %881 = vmatprep.mubr.f32.mxu0 0.0
        %882 = vmatmul.mubr.f32.gmra.mrb[0].mxu0 %v772
        %v883 = vpop.f32.mrb[0].mxu0
        %v884 = vadd.f32 %v806, %v883
        %v885 = vpop.f32.mrb[0].mxu0
        %886 = vmatprep.mubr.f32.mxu0 0.0
        %887 = vmatmul.mubr.f32.gmra.mrb[0].mxu0 %v773
        %v888 = vpop.f32.mrb[0].mxu0
        %v889 = vadd.f32 %v806, %v888
        %v890 = vpop.f32.mrb[0].mxu0
        %891 = vmatprep.mubr.f32.mxu0 0.0
        %892 = vmatmul.mubr.f32.gmra.mrb[0].mxu0 %v774
        %v893 = vpop.f32.mrb[0].mxu0
        %v894 = vadd.f32 %v806, %v893
        %v895 = vpop.f32.mrb[0].mxu0
        %896 = vmatprep.mubr.f32.mxu0 0.0
        %897 = vmatmul.mubr.f32.gmra.mrb[0].mxu0 %v775
        %v898 = vpop.f32.mrb[0].mxu0
        %v899 = vadd.f32 %v806, %v898
        %v900 = vpop.f32.mrb[0].mxu0
        %901 = vmatprep.mubr.f32.mxu0 0.0
        %902 = vmatmul.mubr.f32.gmra.mrb[0].mxu0 %v776
        %v903 = vpop.f32.mrb[0].mxu0
        %v904 = vadd.f32 %v806, %v903
        %v905 = vpop.f32.mrb[0].mxu0
        %906 = vmatprep.mubr.f32.mxu0 0.0
        %907 = vmatmul.mubr.f32.gmra.mrb[0].mxu0 %v777
        %v908 = vpop.f32.mrb[0].mxu0
        %v909 = vadd.f32 %v806, %v908
        %v910 = vpop.f32.mrb[0].mxu0
        %911 = vmatprep.mubr.f32.mxu0 0.0
        %912 = vmatmul.mubr.f32.gmra.mrb[0].mxu0 %v778
        %v913 = vpop.f32.mrb[0].mxu0
        %v914 = vadd.f32 %v806, %v913
        %v915 = vpop.f32.mrb[0].mxu0
        %916 = vmatprep.mubr.f32.mxu0 0.0
        %917 = vmatmul.mubr.f32.gmra.mrb[0].mxu0 %v779
        %v918 = vpop.f32.mrb[0].mxu0
        %v919 = vadd.f32 %v806, %v918
        %v920 = vpop.f32.mrb[0].mxu0
        %921 = vmatprep.mubr.f32.mxu0 0.0
        %922 = vmatmul.mubr.f32.gmra.mrb[0].mxu0 %v780
        %v923 = vpop.f32.mrb[0].mxu0
        %v924 = vadd.f32 %v806, %v923
        %v925 = vpop.f32.mrb[0].mxu0
        %926 = vmatprep.mubr.f32.mxu0 0.0
        %927 = vmatmul.mubr.f32.gmra.mrb[0].mxu0 %v781
        %v928 = vpop.f32.mrb[0].mxu0
        %v929 = vadd.f32 %v806, %v928
        %v930 = vpop.f32.mrb[0].mxu0
        %931 = vmatprep.mubr.f32.mxu0 0.0
        %932 = vmatmul.mubr.f32.gmra.mrb[0].mxu0 %v782
        %v933 = vpop.f32.mrb[0].mxu0
        %v934 = vadd.f32 %v806, %v933
        %v935 = vpop.f32.mrb[0].mxu0
        %936 = vmatprep.mubr.f32.mxu0 0.0
        %937 = vmatmul.mubr.f32.gmra.mrb[0].mxu0 %v783
        %v938 = vpop.f32.mrb[0].mxu0
        %v939 = vadd.f32 %v806, %v938
        %v940 = vpop.f32.mrb[0].mxu0
        %941 = vmatprep.mubr.f32.mxu0 0.0
        %942 = vmatmul.mubr.f32.gmra.mrb[0].mxu0 %v784
        %v943 = vpop.f32.mrb[0].mxu0
        %v944 = vadd.f32 %v806, %v943
        %v945 = vpop.f32.mrb[0].mxu0
        %946 = vmatprep.mubr.f32.mxu0 0.0
        %947 = vmatmul.mubr.f32.gmra.mrb[0].mxu0 %v785
        %v948 = vpop.f32.mrb[0].mxu0
        %v949 = vadd.f32 %v806, %v948
        %v950 = vpop.f32.mrb[0].mxu0
        %951 = vdwg.mxu0
        %952 = vst [vmem:[%s187] sm:$0xff] %v874
        %953 = vst [vmem:[%s187 + $0x8] sm:$0xff] %v879
        %954 = vst [vmem:[%s187 + $0x10] sm:$0xff] %v884
        %955 = vst [vmem:[%s187 + $0x18] sm:$0xff] %v889
        %956 = vst [vmem:[%s187 + $0x20] sm:$0xff] %v894
        %957 = vst [vmem:[%s187 + $0x28] sm:$0xff] %v899
        %958 = vst [vmem:[%s187 + $0x30] sm:$0xff] %v904
        %959 = vst [vmem:[%s187 + $0x38] sm:$0xff] %v909
        %960 = vst [vmem:[%s187 + $0x40] sm:$0xff] %v914
        %961 = vst [vmem:[%s187 + $0x48] sm:$0xff] %v919
        %962 = vst [vmem:[%s187 + $0x50] sm:$0xff] %v924
        %963 = vst [vmem:[%s187 + $0x58] sm:$0xff] %v929
        %964 = vst [vmem:[%s187 + $0x60] sm:$0xff] %v934
        %965 = vst [vmem:[%s187 + $0x68] sm:$0xff] %v939
        %966 = vst [vmem:[%s187 + $0x70] sm:$0xff] %v944
        %967 = vst [vmem:[%s187 + $0x78] sm:$0xff] %v949
        %s968 = smul.u32 16, %s15
        %p969 = scmp.lt.s32.totalorder %s968, 31
        %s970 = scalar_select %p969, %s968, 31
        %s971 = smul.addr %s970, 8
        %s972 = scalar_lea.vmem %s3, %s971
        // Predicated region
        $region37: #{qnet_duel_forward.1} parent=31 // pred_check
          %p973 = pneg %p101
        $region38: #{qnet_duel_forward.1} parent=31 // pred_check_branch
          %975 = sbr.rel (%p973) target = $region40
        $region39: #{qnet_duel_forward.1} parent=31 // pred_region
          %s976 = smul.u32 16, %s15
        $region40: #{qnet_duel_forward.1} parent=31 // pred_fallthru
          _
      $region32: #{qnet_duel_forward.1} parent=5 // pred_fallthru
        _
      %p977 = scmp.le.s32.totalorder 2, %s10
      // Predicated region
      $region41: #{qnet_duel_forward.1} parent=5 // pred_check
        %p978 = pneg %p977
      $region42: #{qnet_duel_forward.1} parent=5 // pred_check_branch
        %980 = sbr.rel (%p978) target = $region44
      $region43: #{qnet_duel_forward.1} parent=5 // pred_region
        %s981 = ssub.s32 %s10, 2
        // Predicated region
        $region45: #{qnet_duel_forward.1} parent=43 // pred_check
          %p982 = pneg %p107
        $region46: #{qnet_duel_forward.1} parent=43 // pred_check_branch
          %984 = sbr.rel (%p982) target = $region48
        $region47: #{qnet_duel_forward.1} parent=43 // pred_region
          %s985 = smul.u32 16, %s16
          %p986 = scmp.lt.s32.totalorder %s985, 31
          %s987 = scalar_select %p986, %s985, 31
          %s988 = smul.addr %s987, 8
          %s989 = scalar_lea.vmem %s3, %s988
        $region48: #{qnet_duel_forward.1} parent=43 // pred_fallthru
          _
      $region44: #{qnet_duel_forward.1} parent=5 // pred_fallthru
        _
    $region6: #{qnet_duel_forward.1} parent=1 // loop_footer
      %s14 = sadd.s32 1, %s10
    $region7: #{qnet_duel_forward.1} parent=1 // loop_footer_branch
      %9 = sbr.rel target = $region3
    $region8: #{qnet_duel_forward.1} parent=1 // loop_exit
      _
    %990 = vsyncpa [#allocation3], 1
    %s991 = scalar_lea.sflag [#allocation3], 1
    %992 = vsyncpa %s991, 1

</llo_original>
